<compile_context>
chip_gen: v5e
topology: v5e:2x2
jax: 0.10.0
libtpu: 0.0.40
codegen_flags: <defaults>
</compile_context>

<pallas_src>
import jax
import jax.numpy as jnp
from jax import lax
from jax.experimental import pallas as pl
from jax.experimental.pallas import tpu as pltpu

LANE = 128            # samples per lane tile
MAX_TILE_LT = 512     # lane tiles (of 128 samples) per grid step -> up to 65536 samples / step


def _round_up(a: int, m: int) -> int:
    return -(-a // m) * m


def _read_wb(w_ref, b_ref):
    """Hoist every SMEM weight/bias scalar read (done once per grid step, outside the chunk loop)."""
    out_f, in_f = w_ref.shape
    w = [[w_ref[j, k] for k in range(in_f)] for j in range(out_f)]
    b = [b_ref[j] for j in range(out_f)]
    return w, b


def _dense_sigmoid(rows, w, b):
    """rows: list of (8,128) slabs (one per input feature) -> list of (8,128) per output feature."""
    outs = []
    for j in range(len(b)):
        acc = rows[0] * w[j][0] + b[j]
        for k in range(1, len(rows)):
            acc = acc + rows[k] * w[j][k]                 # unrolled VPU scalar*vector FMAs, no MXU
        outs.append(0.5 * jnp.tanh(0.5 * acc) + 0.5)      # single EUP op per sigmoid
    return outs


def mlp_kernel(x_ref, w1_ref, b1_ref, w2_ref, b2_ref, w3_ref, b3_ref, o_ref):
    """x_ref: (8, tile_lt, 128) f32 VMEM tile (batch dense on sublanes+lanes).
    w*/b*: PyTorch-layout weights/biases in SMEM, read as scalars (hoisted).
    o_ref: (1, tile_lt, 128) f32 output tile (lane-dense stores)."""
    w1, b1 = _read_wb(w1_ref, b1_ref)
    w2, b2 = _read_wb(w2_ref, b2_ref)
    w3, b3 = _read_wb(w3_ref, b3_ref)

    n_chunks = x_ref.shape[1] // 8          # tile_lt is always a multiple of 8 (see wrapper)

    def chunk_body(c, carry):
        r0 = pl.multiple_of(c * 8, 8)
        rows = [x_ref[k, pl.ds(r0, 8), :] for k in range(8)]   # 8 x (8,128) dense slabs
        h = _dense_sigmoid(rows, w1, b1)    # 8 -> 6
        h = _dense_sigmoid(h, w2, b2)       # 6 -> 4
        h = _dense_sigmoid(h, w3, b3)       # 4 -> 1
        o_ref[0, pl.ds(r0, 8), :] = h[0]    # full-width (8,128) store, no masked vst
        return carry

    # Keep the chunk loop a real loop (bounds vreg live ranges) with a little unroll for
    # scheduler visibility; pick an unroll factor that divides the trip count.
    unroll = 4 if n_chunks % 4 == 0 else (2 if n_chunks % 2 == 0 else 1)
    lax.fori_loop(0, n_chunks, chunk_body, None, unroll=unroll)


@jax.jit
def mlp_forward(x, w1, b1, w2, b2, w3, b3):
    """x: (B, 8) float32 (PyTorch activation layout). w: (out, in), b: (out,)."""
    B = x.shape[0]
    n_lt = -(-B // LANE)                                  # lane tiles needed to cover the batch
    # Large per-step tile (amortize per-step overhead), but split into >=2 blocks when possible
    # so both v7x TensorCores are busy; always a multiple of 8 so (8,128) chunking is exact.
    tile_lt = min(MAX_TILE_LT, _round_up(-(-n_lt // 2), 8))
    n_blocks = -(-n_lt // tile_lt)
    b_pad = n_blocks * tile_lt * LANE

    xt = x.T                                              # (8, B): batch on lanes
    if b_pad != B:
        xt = jnp.pad(xt, ((0, 0), (0, b_pad - B)))
    x3 = xt.reshape(8, n_blocks * tile_lt, LANE)          # contiguous split -> cheap reshape

    smem = pl.BlockSpec(memory_space=pltpu.MemorySpace.SMEM)
    out3 = pl.pallas_call(
        mlp_kernel,
        out_shape=jax.ShapeDtypeStruct((1, n_blocks * tile_lt, LANE), jnp.float32),
        grid=(n_blocks,),
        in_specs=[
            pl.BlockSpec((8, tile_lt, LANE), lambda i: (0, i, 0)),   # batch-tiled activations
            smem, smem,                                              # w1 (6,8), b1 (6,)
            smem, smem,                                              # w2 (4,6), b2 (4,)
            smem, smem,                                              # w3 (1,4), b3 (1,)
        ],
        out_specs=pl.BlockSpec((1, tile_lt, LANE), lambda i: (0, i, 0)),
        compiler_params=pltpu.CompilerParams(
            dimension_semantics=("parallel",)),           # shard batch grid across TCs (v7x)
    )(x3, w1, b1, w2, b2, w3, b3)

    return out3.reshape(-1)[:B].reshape(B, 1)


def init_linear(key, in_f, out_f):
    # PyTorch nn.Linear default init: U(-1/sqrt(in_f), 1/sqrt(in_f)), weight (out, in), bias (out,).
    kw, kb = jax.random.split(key)
    bound = 1.0 / jnp.sqrt(jnp.float32(in_f))
    w = jax.random.uniform(kw, (out_f, in_f), jnp.float32, -bound, bound)
    b = jax.random.uniform(kb, (out_f,), jnp.float32, -bound, bound)
    return w, b


def reference_forward(x, w1, b1, w2, b2, w3, b3):
    h = jax.nn.sigmoid(x @ w1.T + b1)
    h = jax.nn.sigmoid(h @ w2.T + b2)
    return jax.nn.sigmoid(h @ w3.T + b3)


if __name__ == "__main__":
    key = jax.random.PRNGKey(0)
    kx, k1, k2, k3, kx2 = jax.random.split(key, 5)

    w1, b1 = init_linear(k1, 8, 6)
    w2, b2 = init_linear(k2, 6, 4)
    w3, b3 = init_linear(k3, 4, 1)

    # Small batch, matching the module's tiny-input usage.
    B = 8
    x = jax.random.normal(kx, (B, 8), jnp.float32)
    y = jax.block_until_ready(mlp_forward(x, w1, b1, w2, b2, w3, b3))
    y_ref = reference_forward(x, w1, b1, w2, b2, w3, b3)
    assert y.shape == (B, 1)
    # tanh-form sigmoid matches jax.nn.sigmoid to a few f32 ULPs -> slightly loosened tolerance.
    assert jnp.allclose(y, y_ref, atol=2e-5, rtol=2e-5)

    # Larger, non-tile-multiple batch to exercise the multi-block (>=2 grid steps) + padding path.
    B2 = 4100
    x2 = jax.random.normal(kx2, (B2, 8), jnp.float32)
    y2 = jax.block_until_ready(mlp_forward(x2, w1, b1, w2, b2, w3, b3))
    y2_ref = reference_forward(x2, w1, b1, w2, b2, w3, b3)
    assert y2.shape == (B2, 1)
    assert jnp.allclose(y2, y2_ref, atol=2e-5, rtol=2e-5)

    print("KERNEL_OK")
</pallas_src>

<mosaic_0001>
module attributes {stable_mosaic.version = 11 : i64} {
  func.func @mlp_kernel(%arg0: i32, %arg1: memref<8x8x128xf32, #tpu.memory_space<vmem>>, %arg2: memref<6x8xf32, #tpu.memory_space<smem>>, %arg3: memref<6xf32, #tpu.memory_space<smem>>, %arg4: memref<4x6xf32, #tpu.memory_space<smem>>, %arg5: memref<4xf32, #tpu.memory_space<smem>>, %arg6: memref<1x4xf32, #tpu.memory_space<smem>>, %arg7: memref<1xf32, #tpu.memory_space<smem>>, %arg8: memref<1x8x128xf32, #tpu.memory_space<vmem>>) attributes {dimension_semantics = [#tpu.dimension_semantics<parallel>], iteration_bounds = array<i64: 1>, scalar_prefetch = 0 : i64, scratch_operands = 0 : i64, tpu.core_type = #tpu.core_type<tc>, window_params = [{transform_indices = @transform_0, window_bounds = array<i64: 8, 8, 128>}, {transform_indices = @transform_1, window_bounds = array<i64: 6, 8>}, {transform_indices = @transform_2, window_bounds = array<i64: 6>}, {transform_indices = @transform_3, window_bounds = array<i64: 4, 6>}, {transform_indices = @transform_4, window_bounds = array<i64: 4>}, {transform_indices = @transform_5, window_bounds = array<i64: 1, 4>}, {transform_indices = @transform_6, window_bounds = array<i64: 1>}, {transform_indices = @transform_7, window_bounds = array<i64: 1, 8, 128>}]} {
    %c0 = arith.constant 0 : index
    %c0_0 = arith.constant 0 : index
    %0 = memref.load %arg2[%c0, %c0_0] : memref<6x8xf32, #tpu.memory_space<smem>>
    %c0_1 = arith.constant 0 : index
    %c1 = arith.constant 1 : index
    %1 = memref.load %arg2[%c0_1, %c1] : memref<6x8xf32, #tpu.memory_space<smem>>
    %c0_2 = arith.constant 0 : index
    %c2 = arith.constant 2 : index
    %2 = memref.load %arg2[%c0_2, %c2] : memref<6x8xf32, #tpu.memory_space<smem>>
    %c0_3 = arith.constant 0 : index
    %c3 = arith.constant 3 : index
    %3 = memref.load %arg2[%c0_3, %c3] : memref<6x8xf32, #tpu.memory_space<smem>>
    %c0_4 = arith.constant 0 : index
    %c4 = arith.constant 4 : index
    %4 = memref.load %arg2[%c0_4, %c4] : memref<6x8xf32, #tpu.memory_space<smem>>
    %c0_5 = arith.constant 0 : index
    %c5 = arith.constant 5 : index
    %5 = memref.load %arg2[%c0_5, %c5] : memref<6x8xf32, #tpu.memory_space<smem>>
    %c0_6 = arith.constant 0 : index
    %c6 = arith.constant 6 : index
    %6 = memref.load %arg2[%c0_6, %c6] : memref<6x8xf32, #tpu.memory_space<smem>>
    %c0_7 = arith.constant 0 : index
    %c7 = arith.constant 7 : index
    %7 = memref.load %arg2[%c0_7, %c7] : memref<6x8xf32, #tpu.memory_space<smem>>
    %c1_8 = arith.constant 1 : index
    %c0_9 = arith.constant 0 : index
    %8 = memref.load %arg2[%c1_8, %c0_9] : memref<6x8xf32, #tpu.memory_space<smem>>
    %c1_10 = arith.constant 1 : index
    %c1_11 = arith.constant 1 : index
    %9 = memref.load %arg2[%c1_10, %c1_11] : memref<6x8xf32, #tpu.memory_space<smem>>
    %c1_12 = arith.constant 1 : index
    %c2_13 = arith.constant 2 : index
    %10 = memref.load %arg2[%c1_12, %c2_13] : memref<6x8xf32, #tpu.memory_space<smem>>
    %c1_14 = arith.constant 1 : index
    %c3_15 = arith.constant 3 : index
    %11 = memref.load %arg2[%c1_14, %c3_15] : memref<6x8xf32, #tpu.memory_space<smem>>
    %c1_16 = arith.constant 1 : index
    %c4_17 = arith.constant 4 : index
    %12 = memref.load %arg2[%c1_16, %c4_17] : memref<6x8xf32, #tpu.memory_space<smem>>
    %c1_18 = arith.constant 1 : index
    %c5_19 = arith.constant 5 : index
    %13 = memref.load %arg2[%c1_18, %c5_19] : memref<6x8xf32, #tpu.memory_space<smem>>
    %c1_20 = arith.constant 1 : index
    %c6_21 = arith.constant 6 : index
    %14 = memref.load %arg2[%c1_20, %c6_21] : memref<6x8xf32, #tpu.memory_space<smem>>
    %c1_22 = arith.constant 1 : index
    %c7_23 = arith.constant 7 : index
    %15 = memref.load %arg2[%c1_22, %c7_23] : memref<6x8xf32, #tpu.memory_space<smem>>
    %c2_24 = arith.constant 2 : index
    %c0_25 = arith.constant 0 : index
    %16 = memref.load %arg2[%c2_24, %c0_25] : memref<6x8xf32, #tpu.memory_space<smem>>
    %c2_26 = arith.constant 2 : index
    %c1_27 = arith.constant 1 : index
    %17 = memref.load %arg2[%c2_26, %c1_27] : memref<6x8xf32, #tpu.memory_space<smem>>
    %c2_28 = arith.constant 2 : index
    %c2_29 = arith.constant 2 : index
    %18 = memref.load %arg2[%c2_28, %c2_29] : memref<6x8xf32, #tpu.memory_space<smem>>
    %c2_30 = arith.constant 2 : index
    %c3_31 = arith.constant 3 : index
    %19 = memref.load %arg2[%c2_30, %c3_31] : memref<6x8xf32, #tpu.memory_space<smem>>
    %c2_32 = arith.constant 2 : index
    %c4_33 = arith.constant 4 : index
    %20 = memref.load %arg2[%c2_32, %c4_33] : memref<6x8xf32, #tpu.memory_space<smem>>
    %c2_34 = arith.constant 2 : index
    %c5_35 = arith.constant 5 : index
    %21 = memref.load %arg2[%c2_34, %c5_35] : memref<6x8xf32, #tpu.memory_space<smem>>
    %c2_36 = arith.constant 2 : index
    %c6_37 = arith.constant 6 : index
    %22 = memref.load %arg2[%c2_36, %c6_37] : memref<6x8xf32, #tpu.memory_space<smem>>
    %c2_38 = arith.constant 2 : index
    %c7_39 = arith.constant 7 : index
    %23 = memref.load %arg2[%c2_38, %c7_39] : memref<6x8xf32, #tpu.memory_space<smem>>
    %c3_40 = arith.constant 3 : index
    %c0_41 = arith.constant 0 : index
    %24 = memref.load %arg2[%c3_40, %c0_41] : memref<6x8xf32, #tpu.memory_space<smem>>
    %c3_42 = arith.constant 3 : index
    %c1_43 = arith.constant 1 : index
    %25 = memref.load %arg2[%c3_42, %c1_43] : memref<6x8xf32, #tpu.memory_space<smem>>
    %c3_44 = arith.constant 3 : index
    %c2_45 = arith.constant 2 : index
    %26 = memref.load %arg2[%c3_44, %c2_45] : memref<6x8xf32, #tpu.memory_space<smem>>
    %c3_46 = arith.constant 3 : index
    %c3_47 = arith.constant 3 : index
    %27 = memref.load %arg2[%c3_46, %c3_47] : memref<6x8xf32, #tpu.memory_space<smem>>
    %c3_48 = arith.constant 3 : index
    %c4_49 = arith.constant 4 : index
    %28 = memref.load %arg2[%c3_48, %c4_49] : memref<6x8xf32, #tpu.memory_space<smem>>
    %c3_50 = arith.constant 3 : index
    %c5_51 = arith.constant 5 : index
    %29 = memref.load %arg2[%c3_50, %c5_51] : memref<6x8xf32, #tpu.memory_space<smem>>
    %c3_52 = arith.constant 3 : index
    %c6_53 = arith.constant 6 : index
    %30 = memref.load %arg2[%c3_52, %c6_53] : memref<6x8xf32, #tpu.memory_space<smem>>
    %c3_54 = arith.constant 3 : index
    %c7_55 = arith.constant 7 : index
    %31 = memref.load %arg2[%c3_54, %c7_55] : memref<6x8xf32, #tpu.memory_space<smem>>
    %c4_56 = arith.constant 4 : index
    %c0_57 = arith.constant 0 : index
    %32 = memref.load %arg2[%c4_56, %c0_57] : memref<6x8xf32, #tpu.memory_space<smem>>
    %c4_58 = arith.constant 4 : index
    %c1_59 = arith.constant 1 : index
    %33 = memref.load %arg2[%c4_58, %c1_59] : memref<6x8xf32, #tpu.memory_space<smem>>
    %c4_60 = arith.constant 4 : index
    %c2_61 = arith.constant 2 : index
    %34 = memref.load %arg2[%c4_60, %c2_61] : memref<6x8xf32, #tpu.memory_space<smem>>
    %c4_62 = arith.constant 4 : index
    %c3_63 = arith.constant 3 : index
    %35 = memref.load %arg2[%c4_62, %c3_63] : memref<6x8xf32, #tpu.memory_space<smem>>
    %c4_64 = arith.constant 4 : index
    %c4_65 = arith.constant 4 : index
    %36 = memref.load %arg2[%c4_64, %c4_65] : memref<6x8xf32, #tpu.memory_space<smem>>
    %c4_66 = arith.constant 4 : index
    %c5_67 = arith.constant 5 : index
    %37 = memref.load %arg2[%c4_66, %c5_67] : memref<6x8xf32, #tpu.memory_space<smem>>
    %c4_68 = arith.constant 4 : index
    %c6_69 = arith.constant 6 : index
    %38 = memref.load %arg2[%c4_68, %c6_69] : memref<6x8xf32, #tpu.memory_space<smem>>
    %c4_70 = arith.constant 4 : index
    %c7_71 = arith.constant 7 : index
    %39 = memref.load %arg2[%c4_70, %c7_71] : memref<6x8xf32, #tpu.memory_space<smem>>
    %c5_72 = arith.constant 5 : index
    %c0_73 = arith.constant 0 : index
    %40 = memref.load %arg2[%c5_72, %c0_73] : memref<6x8xf32, #tpu.memory_space<smem>>
    %c5_74 = arith.constant 5 : index
    %c1_75 = arith.constant 1 : index
    %41 = memref.load %arg2[%c5_74, %c1_75] : memref<6x8xf32, #tpu.memory_space<smem>>
    %c5_76 = arith.constant 5 : index
    %c2_77 = arith.constant 2 : index
    %42 = memref.load %arg2[%c5_76, %c2_77] : memref<6x8xf32, #tpu.memory_space<smem>>
    %c5_78 = arith.constant 5 : index
    %c3_79 = arith.constant 3 : index
    %43 = memref.load %arg2[%c5_78, %c3_79] : memref<6x8xf32, #tpu.memory_space<smem>>
    %c5_80 = arith.constant 5 : index
    %c4_81 = arith.constant 4 : index
    %44 = memref.load %arg2[%c5_80, %c4_81] : memref<6x8xf32, #tpu.memory_space<smem>>
    %c5_82 = arith.constant 5 : index
    %c5_83 = arith.constant 5 : index
    %45 = memref.load %arg2[%c5_82, %c5_83] : memref<6x8xf32, #tpu.memory_space<smem>>
    %c5_84 = arith.constant 5 : index
    %c6_85 = arith.constant 6 : index
    %46 = memref.load %arg2[%c5_84, %c6_85] : memref<6x8xf32, #tpu.memory_space<smem>>
    %c5_86 = arith.constant 5 : index
    %c7_87 = arith.constant 7 : index
    %47 = memref.load %arg2[%c5_86, %c7_87] : memref<6x8xf32, #tpu.memory_space<smem>>
    %c0_88 = arith.constant 0 : index
    %48 = memref.load %arg3[%c0_88] : memref<6xf32, #tpu.memory_space<smem>>
    %c1_89 = arith.constant 1 : index
    %49 = memref.load %arg3[%c1_89] : memref<6xf32, #tpu.memory_space<smem>>
    %c2_90 = arith.constant 2 : index
    %50 = memref.load %arg3[%c2_90] : memref<6xf32, #tpu.memory_space<smem>>
    %c3_91 = arith.constant 3 : index
    %51 = memref.load %arg3[%c3_91] : memref<6xf32, #tpu.memory_space<smem>>
    %c4_92 = arith.constant 4 : index
    %52 = memref.load %arg3[%c4_92] : memref<6xf32, #tpu.memory_space<smem>>
    %c5_93 = arith.constant 5 : index
    %53 = memref.load %arg3[%c5_93] : memref<6xf32, #tpu.memory_space<smem>>
    %c0_94 = arith.constant 0 : index
    %c0_95 = arith.constant 0 : index
    %54 = memref.load %arg4[%c0_94, %c0_95] : memref<4x6xf32, #tpu.memory_space<smem>>
    %c0_96 = arith.constant 0 : index
    %c1_97 = arith.constant 1 : index
    %55 = memref.load %arg4[%c0_96, %c1_97] : memref<4x6xf32, #tpu.memory_space<smem>>
    %c0_98 = arith.constant 0 : index
    %c2_99 = arith.constant 2 : index
    %56 = memref.load %arg4[%c0_98, %c2_99] : memref<4x6xf32, #tpu.memory_space<smem>>
    %c0_100 = arith.constant 0 : index
    %c3_101 = arith.constant 3 : index
    %57 = memref.load %arg4[%c0_100, %c3_101] : memref<4x6xf32, #tpu.memory_space<smem>>
    %c0_102 = arith.constant 0 : index
    %c4_103 = arith.constant 4 : index
    %58 = memref.load %arg4[%c0_102, %c4_103] : memref<4x6xf32, #tpu.memory_space<smem>>
    %c0_104 = arith.constant 0 : index
    %c5_105 = arith.constant 5 : index
    %59 = memref.load %arg4[%c0_104, %c5_105] : memref<4x6xf32, #tpu.memory_space<smem>>
    %c1_106 = arith.constant 1 : index
    %c0_107 = arith.constant 0 : index
    %60 = memref.load %arg4[%c1_106, %c0_107] : memref<4x6xf32, #tpu.memory_space<smem>>
    %c1_108 = arith.constant 1 : index
    %c1_109 = arith.constant 1 : index
    %61 = memref.load %arg4[%c1_108, %c1_109] : memref<4x6xf32, #tpu.memory_space<smem>>
    %c1_110 = arith.constant 1 : index
    %c2_111 = arith.constant 2 : index
    %62 = memref.load %arg4[%c1_110, %c2_111] : memref<4x6xf32, #tpu.memory_space<smem>>
    %c1_112 = arith.constant 1 : index
    %c3_113 = arith.constant 3 : index
    %63 = memref.load %arg4[%c1_112, %c3_113] : memref<4x6xf32, #tpu.memory_space<smem>>
    %c1_114 = arith.constant 1 : index
    %c4_115 = arith.constant 4 : index
    %64 = memref.load %arg4[%c1_114, %c4_115] : memref<4x6xf32, #tpu.memory_space<smem>>
    %c1_116 = arith.constant 1 : index
    %c5_117 = arith.constant 5 : index
    %65 = memref.load %arg4[%c1_116, %c5_117] : memref<4x6xf32, #tpu.memory_space<smem>>
    %c2_118 = arith.constant 2 : index
    %c0_119 = arith.constant 0 : index
    %66 = memref.load %arg4[%c2_118, %c0_119] : memref<4x6xf32, #tpu.memory_space<smem>>
    %c2_120 = arith.constant 2 : index
    %c1_121 = arith.constant 1 : index
    %67 = memref.load %arg4[%c2_120, %c1_121] : memref<4x6xf32, #tpu.memory_space<smem>>
    %c2_122 = arith.constant 2 : index
    %c2_123 = arith.constant 2 : index
    %68 = memref.load %arg4[%c2_122, %c2_123] : memref<4x6xf32, #tpu.memory_space<smem>>
    %c2_124 = arith.constant 2 : index
    %c3_125 = arith.constant 3 : index
    %69 = memref.load %arg4[%c2_124, %c3_125] : memref<4x6xf32, #tpu.memory_space<smem>>
    %c2_126 = arith.constant 2 : index
    %c4_127 = arith.constant 4 : index
    %70 = memref.load %arg4[%c2_126, %c4_127] : memref<4x6xf32, #tpu.memory_space<smem>>
    %c2_128 = arith.constant 2 : index
    %c5_129 = arith.constant 5 : index
    %71 = memref.load %arg4[%c2_128, %c5_129] : memref<4x6xf32, #tpu.memory_space<smem>>
    %c3_130 = arith.constant 3 : index
    %c0_131 = arith.constant 0 : index
    %72 = memref.load %arg4[%c3_130, %c0_131] : memref<4x6xf32, #tpu.memory_space<smem>>
    %c3_132 = arith.constant 3 : index
    %c1_133 = arith.constant 1 : index
    %73 = memref.load %arg4[%c3_132, %c1_133] : memref<4x6xf32, #tpu.memory_space<smem>>
    %c3_134 = arith.constant 3 : index
    %c2_135 = arith.constant 2 : index
    %74 = memref.load %arg4[%c3_134, %c2_135] : memref<4x6xf32, #tpu.memory_space<smem>>
    %c3_136 = arith.constant 3 : index
    %c3_137 = arith.constant 3 : index
    %75 = memref.load %arg4[%c3_136, %c3_137] : memref<4x6xf32, #tpu.memory_space<smem>>
    %c3_138 = arith.constant 3 : index
    %c4_139 = arith.constant 4 : index
    %76 = memref.load %arg4[%c3_138, %c4_139] : memref<4x6xf32, #tpu.memory_space<smem>>
    %c3_140 = arith.constant 3 : index
    %c5_141 = arith.constant 5 : index
    %77 = memref.load %arg4[%c3_140, %c5_141] : memref<4x6xf32, #tpu.memory_space<smem>>
    %c0_142 = arith.constant 0 : index
    %78 = memref.load %arg5[%c0_142] : memref<4xf32, #tpu.memory_space<smem>>
    %c1_143 = arith.constant 1 : index
    %79 = memref.load %arg5[%c1_143] : memref<4xf32, #tpu.memory_space<smem>>
    %c2_144 = arith.constant 2 : index
    %80 = memref.load %arg5[%c2_144] : memref<4xf32, #tpu.memory_space<smem>>
    %c3_145 = arith.constant 3 : index
    %81 = memref.load %arg5[%c3_145] : memref<4xf32, #tpu.memory_space<smem>>
    %c0_146 = arith.constant 0 : index
    %c0_147 = arith.constant 0 : index
    %82 = memref.load %arg6[%c0_146, %c0_147] : memref<1x4xf32, #tpu.memory_space<smem>>
    %c0_148 = arith.constant 0 : index
    %c1_149 = arith.constant 1 : index
    %83 = memref.load %arg6[%c0_148, %c1_149] : memref<1x4xf32, #tpu.memory_space<smem>>
    %c0_150 = arith.constant 0 : index
    %c2_151 = arith.constant 2 : index
    %84 = memref.load %arg6[%c0_150, %c2_151] : memref<1x4xf32, #tpu.memory_space<smem>>
    %c0_152 = arith.constant 0 : index
    %c3_153 = arith.constant 3 : index
    %85 = memref.load %arg6[%c0_152, %c3_153] : memref<1x4xf32, #tpu.memory_space<smem>>
    %c0_154 = arith.constant 0 : index
    %86 = memref.load %arg7[%c0_154] : memref<1xf32, #tpu.memory_space<smem>>
    %c0_i32 = arith.constant 0 : i32
    %c8_i32 = arith.constant 8 : i32
    %87 = arith.muli %c0_i32, %c8_i32 : i32
    %88 = tpu.assume_multiple %87, 8 : i32
    %c0_155 = arith.constant 0 : index
    %89 = arith.index_cast %88 : i32 to index
    %c0_156 = arith.constant 0 : index
    %90 = vector.load %arg1[%c0_155, %89, %c0_156] : memref<8x8x128xf32, #tpu.memory_space<vmem>>, vector<1x8x128xf32>
    %91 = vector.shape_cast %90 : vector<1x8x128xf32> to vector<8x128xf32>
    %c1_157 = arith.constant 1 : index
    %92 = arith.index_cast %88 : i32 to index
    %c0_158 = arith.constant 0 : index
    %93 = vector.load %arg1[%c1_157, %92, %c0_158] : memref<8x8x128xf32, #tpu.memory_space<vmem>>, vector<1x8x128xf32>
    %94 = vector.shape_cast %93 : vector<1x8x128xf32> to vector<8x128xf32>
    %c2_159 = arith.constant 2 : index
    %95 = arith.index_cast %88 : i32 to index
    %c0_160 = arith.constant 0 : index
    %96 = vector.load %arg1[%c2_159, %95, %c0_160] : memref<8x8x128xf32, #tpu.memory_space<vmem>>, vector<1x8x128xf32>
    %97 = vector.shape_cast %96 : vector<1x8x128xf32> to vector<8x128xf32>
    %c3_161 = arith.constant 3 : index
    %98 = arith.index_cast %88 : i32 to index
    %c0_162 = arith.constant 0 : index
    %99 = vector.load %arg1[%c3_161, %98, %c0_162] : memref<8x8x128xf32, #tpu.memory_space<vmem>>, vector<1x8x128xf32>
    %100 = vector.shape_cast %99 : vector<1x8x128xf32> to vector<8x128xf32>
    %c4_163 = arith.constant 4 : index
    %101 = arith.index_cast %88 : i32 to index
    %c0_164 = arith.constant 0 : index
    %102 = vector.load %arg1[%c4_163, %101, %c0_164] : memref<8x8x128xf32, #tpu.memory_space<vmem>>, vector<1x8x128xf32>
    %103 = vector.shape_cast %102 : vector<1x8x128xf32> to vector<8x128xf32>
    %c5_165 = arith.constant 5 : index
    %104 = arith.index_cast %88 : i32 to index
    %c0_166 = arith.constant 0 : index
    %105 = vector.load %arg1[%c5_165, %104, %c0_166] : memref<8x8x128xf32, #tpu.memory_space<vmem>>, vector<1x8x128xf32>
    %106 = vector.shape_cast %105 : vector<1x8x128xf32> to vector<8x128xf32>
    %c6_167 = arith.constant 6 : index
    %107 = arith.index_cast %88 : i32 to index
    %c0_168 = arith.constant 0 : index
    %108 = vector.load %arg1[%c6_167, %107, %c0_168] : memref<8x8x128xf32, #tpu.memory_space<vmem>>, vector<1x8x128xf32>
    %109 = vector.shape_cast %108 : vector<1x8x128xf32> to vector<8x128xf32>
    %c7_169 = arith.constant 7 : index
    %110 = arith.index_cast %88 : i32 to index
    %c0_170 = arith.constant 0 : index
    %111 = vector.load %arg1[%c7_169, %110, %c0_170] : memref<8x8x128xf32, #tpu.memory_space<vmem>>, vector<1x8x128xf32>
    %112 = vector.shape_cast %111 : vector<1x8x128xf32> to vector<8x128xf32>
    %113 = vector.broadcast %0 : f32 to vector<8x128xf32>
    %114 = arith.mulf %91, %113 : vector<8x128xf32>
    %115 = vector.broadcast %48 : f32 to vector<8x128xf32>
    %116 = arith.addf %114, %115 : vector<8x128xf32>
    %117 = vector.broadcast %1 : f32 to vector<8x128xf32>
    %118 = arith.mulf %94, %117 : vector<8x128xf32>
    %119 = arith.addf %116, %118 : vector<8x128xf32>
    %120 = vector.broadcast %2 : f32 to vector<8x128xf32>
    %121 = arith.mulf %97, %120 : vector<8x128xf32>
    %122 = arith.addf %119, %121 : vector<8x128xf32>
    %123 = vector.broadcast %3 : f32 to vector<8x128xf32>
    %124 = arith.mulf %100, %123 : vector<8x128xf32>
    %125 = arith.addf %122, %124 : vector<8x128xf32>
    %126 = vector.broadcast %4 : f32 to vector<8x128xf32>
    %127 = arith.mulf %103, %126 : vector<8x128xf32>
    %128 = arith.addf %125, %127 : vector<8x128xf32>
    %129 = vector.broadcast %5 : f32 to vector<8x128xf32>
    %130 = arith.mulf %106, %129 : vector<8x128xf32>
    %131 = arith.addf %128, %130 : vector<8x128xf32>
    %132 = vector.broadcast %6 : f32 to vector<8x128xf32>
    %133 = arith.mulf %109, %132 : vector<8x128xf32>
    %134 = arith.addf %131, %133 : vector<8x128xf32>
    %135 = vector.broadcast %7 : f32 to vector<8x128xf32>
    %136 = arith.mulf %112, %135 : vector<8x128xf32>
    %137 = arith.addf %134, %136 : vector<8x128xf32>
    %cst = arith.constant 5.000000e-01 : f32
    %138 = vector.broadcast %cst : f32 to vector<8x128xf32>
    %139 = arith.mulf %138, %137 : vector<8x128xf32>
    %140 = math.tanh %139 : vector<8x128xf32>
    %cst_171 = arith.constant 5.000000e-01 : f32
    %141 = vector.broadcast %cst_171 : f32 to vector<8x128xf32>
    %142 = arith.mulf %141, %140 : vector<8x128xf32>
    %cst_172 = arith.constant 5.000000e-01 : f32
    %143 = vector.broadcast %cst_172 : f32 to vector<8x128xf32>
    %144 = arith.addf %142, %143 : vector<8x128xf32>
    %145 = vector.broadcast %8 : f32 to vector<8x128xf32>
    %146 = arith.mulf %91, %145 : vector<8x128xf32>
    %147 = vector.broadcast %49 : f32 to vector<8x128xf32>
    %148 = arith.addf %146, %147 : vector<8x128xf32>
    %149 = vector.broadcast %9 : f32 to vector<8x128xf32>
    %150 = arith.mulf %94, %149 : vector<8x128xf32>
    %151 = arith.addf %148, %150 : vector<8x128xf32>
    %152 = vector.broadcast %10 : f32 to vector<8x128xf32>
    %153 = arith.mulf %97, %152 : vector<8x128xf32>
    %154 = arith.addf %151, %153 : vector<8x128xf32>
    %155 = vector.broadcast %11 : f32 to vector<8x128xf32>
    %156 = arith.mulf %100, %155 : vector<8x128xf32>
    %157 = arith.addf %154, %156 : vector<8x128xf32>
    %158 = vector.broadcast %12 : f32 to vector<8x128xf32>
    %159 = arith.mulf %103, %158 : vector<8x128xf32>
    %160 = arith.addf %157, %159 : vector<8x128xf32>
    %161 = vector.broadcast %13 : f32 to vector<8x128xf32>
    %162 = arith.mulf %106, %161 : vector<8x128xf32>
    %163 = arith.addf %160, %162 : vector<8x128xf32>
    %164 = vector.broadcast %14 : f32 to vector<8x128xf32>
    %165 = arith.mulf %109, %164 : vector<8x128xf32>
    %166 = arith.addf %163, %165 : vector<8x128xf32>
    %167 = vector.broadcast %15 : f32 to vector<8x128xf32>
    %168 = arith.mulf %112, %167 : vector<8x128xf32>
    %169 = arith.addf %166, %168 : vector<8x128xf32>
    %cst_173 = arith.constant 5.000000e-01 : f32
    %170 = vector.broadcast %cst_173 : f32 to vector<8x128xf32>
    %171 = arith.mulf %170, %169 : vector<8x128xf32>
    %172 = math.tanh %171 : vector<8x128xf32>
    %cst_174 = arith.constant 5.000000e-01 : f32
    %173 = vector.broadcast %cst_174 : f32 to vector<8x128xf32>
    %174 = arith.mulf %173, %172 : vector<8x128xf32>
    %cst_175 = arith.constant 5.000000e-01 : f32
    %175 = vector.broadcast %cst_175 : f32 to vector<8x128xf32>
    %176 = arith.addf %174, %175 : vector<8x128xf32>
    %177 = vector.broadcast %16 : f32 to vector<8x128xf32>
    %178 = arith.mulf %91, %177 : vector<8x128xf32>
    %179 = vector.broadcast %50 : f32 to vector<8x128xf32>
    %180 = arith.addf %178, %179 : vector<8x128xf32>
    %181 = vector.broadcast %17 : f32 to vector<8x128xf32>
    %182 = arith.mulf %94, %181 : vector<8x128xf32>
    %183 = arith.addf %180, %182 : vector<8x128xf32>
    %184 = vector.broadcast %18 : f32 to vector<8x128xf32>
    %185 = arith.mulf %97, %184 : vector<8x128xf32>
    %186 = arith.addf %183, %185 : vector<8x128xf32>
    %187 = vector.broadcast %19 : f32 to vector<8x128xf32>
    %188 = arith.mulf %100, %187 : vector<8x128xf32>
    %189 = arith.addf %186, %188 : vector<8x128xf32>
    %190 = vector.broadcast %20 : f32 to vector<8x128xf32>
    %191 = arith.mulf %103, %190 : vector<8x128xf32>
    %192 = arith.addf %189, %191 : vector<8x128xf32>
    %193 = vector.broadcast %21 : f32 to vector<8x128xf32>
    %194 = arith.mulf %106, %193 : vector<8x128xf32>
    %195 = arith.addf %192, %194 : vector<8x128xf32>
    %196 = vector.broadcast %22 : f32 to vector<8x128xf32>
    %197 = arith.mulf %109, %196 : vector<8x128xf32>
    %198 = arith.addf %195, %197 : vector<8x128xf32>
    %199 = vector.broadcast %23 : f32 to vector<8x128xf32>
    %200 = arith.mulf %112, %199 : vector<8x128xf32>
    %201 = arith.addf %198, %200 : vector<8x128xf32>
    %cst_176 = arith.constant 5.000000e-01 : f32
    %202 = vector.broadcast %cst_176 : f32 to vector<8x128xf32>
    %203 = arith.mulf %202, %201 : vector<8x128xf32>
    %204 = math.tanh %203 : vector<8x128xf32>
    %cst_177 = arith.constant 5.000000e-01 : f32
    %205 = vector.broadcast %cst_177 : f32 to vector<8x128xf32>
    %206 = arith.mulf %205, %204 : vector<8x128xf32>
    %cst_178 = arith.constant 5.000000e-01 : f32
    %207 = vector.broadcast %cst_178 : f32 to vector<8x128xf32>
    %208 = arith.addf %206, %207 : vector<8x128xf32>
    %209 = vector.broadcast %24 : f32 to vector<8x128xf32>
    %210 = arith.mulf %91, %209 : vector<8x128xf32>
    %211 = vector.broadcast %51 : f32 to vector<8x128xf32>
    %212 = arith.addf %210, %211 : vector<8x128xf32>
    %213 = vector.broadcast %25 : f32 to vector<8x128xf32>
    %214 = arith.mulf %94, %213 : vector<8x128xf32>
    %215 = arith.addf %212, %214 : vector<8x128xf32>
    %216 = vector.broadcast %26 : f32 to vector<8x128xf32>
    %217 = arith.mulf %97, %216 : vector<8x128xf32>
    %218 = arith.addf %215, %217 : vector<8x128xf32>
    %219 = vector.broadcast %27 : f32 to vector<8x128xf32>
    %220 = arith.mulf %100, %219 : vector<8x128xf32>
    %221 = arith.addf %218, %220 : vector<8x128xf32>
    %222 = vector.broadcast %28 : f32 to vector<8x128xf32>
    %223 = arith.mulf %103, %222 : vector<8x128xf32>
    %224 = arith.addf %221, %223 : vector<8x128xf32>
    %225 = vector.broadcast %29 : f32 to vector<8x128xf32>
    %226 = arith.mulf %106, %225 : vector<8x128xf32>
    %227 = arith.addf %224, %226 : vector<8x128xf32>
    %228 = vector.broadcast %30 : f32 to vector<8x128xf32>
    %229 = arith.mulf %109, %228 : vector<8x128xf32>
    %230 = arith.addf %227, %229 : vector<8x128xf32>
    %231 = vector.broadcast %31 : f32 to vector<8x128xf32>
    %232 = arith.mulf %112, %231 : vector<8x128xf32>
    %233 = arith.addf %230, %232 : vector<8x128xf32>
    %cst_179 = arith.constant 5.000000e-01 : f32
    %234 = vector.broadcast %cst_179 : f32 to vector<8x128xf32>
    %235 = arith.mulf %234, %233 : vector<8x128xf32>
    %236 = math.tanh %235 : vector<8x128xf32>
    %cst_180 = arith.constant 5.000000e-01 : f32
    %237 = vector.broadcast %cst_180 : f32 to vector<8x128xf32>
    %238 = arith.mulf %237, %236 : vector<8x128xf32>
    %cst_181 = arith.constant 5.000000e-01 : f32
    %239 = vector.broadcast %cst_181 : f32 to vector<8x128xf32>
    %240 = arith.addf %238, %239 : vector<8x128xf32>
    %241 = vector.broadcast %32 : f32 to vector<8x128xf32>
    %242 = arith.mulf %91, %241 : vector<8x128xf32>
    %243 = vector.broadcast %52 : f32 to vector<8x128xf32>
    %244 = arith.addf %242, %243 : vector<8x128xf32>
    %245 = vector.broadcast %33 : f32 to vector<8x128xf32>
    %246 = arith.mulf %94, %245 : vector<8x128xf32>
    %247 = arith.addf %244, %246 : vector<8x128xf32>
    %248 = vector.broadcast %34 : f32 to vector<8x128xf32>
    %249 = arith.mulf %97, %248 : vector<8x128xf32>
    %250 = arith.addf %247, %249 : vector<8x128xf32>
    %251 = vector.broadcast %35 : f32 to vector<8x128xf32>
    %252 = arith.mulf %100, %251 : vector<8x128xf32>
    %253 = arith.addf %250, %252 : vector<8x128xf32>
    %254 = vector.broadcast %36 : f32 to vector<8x128xf32>
    %255 = arith.mulf %103, %254 : vector<8x128xf32>
    %256 = arith.addf %253, %255 : vector<8x128xf32>
    %257 = vector.broadcast %37 : f32 to vector<8x128xf32>
    %258 = arith.mulf %106, %257 : vector<8x128xf32>
    %259 = arith.addf %256, %258 : vector<8x128xf32>
    %260 = vector.broadcast %38 : f32 to vector<8x128xf32>
    %261 = arith.mulf %109, %260 : vector<8x128xf32>
    %262 = arith.addf %259, %261 : vector<8x128xf32>
    %263 = vector.broadcast %39 : f32 to vector<8x128xf32>
    %264 = arith.mulf %112, %263 : vector<8x128xf32>
    %265 = arith.addf %262, %264 : vector<8x128xf32>
    %cst_182 = arith.constant 5.000000e-01 : f32
    %266 = vector.broadcast %cst_182 : f32 to vector<8x128xf32>
    %267 = arith.mulf %266, %265 : vector<8x128xf32>
    %268 = math.tanh %267 : vector<8x128xf32>
    %cst_183 = arith.constant 5.000000e-01 : f32
    %269 = vector.broadcast %cst_183 : f32 to vector<8x128xf32>
    %270 = arith.mulf %269, %268 : vector<8x128xf32>
    %cst_184 = arith.constant 5.000000e-01 : f32
    %271 = vector.broadcast %cst_184 : f32 to vector<8x128xf32>
    %272 = arith.addf %270, %271 : vector<8x128xf32>
    %273 = vector.broadcast %40 : f32 to vector<8x128xf32>
    %274 = arith.mulf %91, %273 : vector<8x128xf32>
    %275 = vector.broadcast %53 : f32 to vector<8x128xf32>
    %276 = arith.addf %274, %275 : vector<8x128xf32>
    %277 = vector.broadcast %41 : f32 to vector<8x128xf32>
    %278 = arith.mulf %94, %277 : vector<8x128xf32>
    %279 = arith.addf %276, %278 : vector<8x128xf32>
    %280 = vector.broadcast %42 : f32 to vector<8x128xf32>
    %281 = arith.mulf %97, %280 : vector<8x128xf32>
    %282 = arith.addf %279, %281 : vector<8x128xf32>
    %283 = vector.broadcast %43 : f32 to vector<8x128xf32>
    %284 = arith.mulf %100, %283 : vector<8x128xf32>
    %285 = arith.addf %282, %284 : vector<8x128xf32>
    %286 = vector.broadcast %44 : f32 to vector<8x128xf32>
    %287 = arith.mulf %103, %286 : vector<8x128xf32>
    %288 = arith.addf %285, %287 : vector<8x128xf32>
    %289 = vector.broadcast %45 : f32 to vector<8x128xf32>
    %290 = arith.mulf %106, %289 : vector<8x128xf32>
    %291 = arith.addf %288, %290 : vector<8x128xf32>
    %292 = vector.broadcast %46 : f32 to vector<8x128xf32>
    %293 = arith.mulf %109, %292 : vector<8x128xf32>
    %294 = arith.addf %291, %293 : vector<8x128xf32>
    %295 = vector.broadcast %47 : f32 to vector<8x128xf32>
    %296 = arith.mulf %112, %295 : vector<8x128xf32>
    %297 = arith.addf %294, %296 : vector<8x128xf32>
    %cst_185 = arith.constant 5.000000e-01 : f32
    %298 = vector.broadcast %cst_185 : f32 to vector<8x128xf32>
    %299 = arith.mulf %298, %297 : vector<8x128xf32>
    %300 = math.tanh %299 : vector<8x128xf32>
    %cst_186 = arith.constant 5.000000e-01 : f32
    %301 = vector.broadcast %cst_186 : f32 to vector<8x128xf32>
    %302 = arith.mulf %301, %300 : vector<8x128xf32>
    %cst_187 = arith.constant 5.000000e-01 : f32
    %303 = vector.broadcast %cst_187 : f32 to vector<8x128xf32>
    %304 = arith.addf %302, %303 : vector<8x128xf32>
    %305 = vector.broadcast %54 : f32 to vector<8x128xf32>
    %306 = arith.mulf %144, %305 : vector<8x128xf32>
    %307 = vector.broadcast %78 : f32 to vector<8x128xf32>
    %308 = arith.addf %306, %307 : vector<8x128xf32>
    %309 = vector.broadcast %55 : f32 to vector<8x128xf32>
    %310 = arith.mulf %176, %309 : vector<8x128xf32>
    %311 = arith.addf %308, %310 : vector<8x128xf32>
    %312 = vector.broadcast %56 : f32 to vector<8x128xf32>
    %313 = arith.mulf %208, %312 : vector<8x128xf32>
    %314 = arith.addf %311, %313 : vector<8x128xf32>
    %315 = vector.broadcast %57 : f32 to vector<8x128xf32>
    %316 = arith.mulf %240, %315 : vector<8x128xf32>
    %317 = arith.addf %314, %316 : vector<8x128xf32>
    %318 = vector.broadcast %58 : f32 to vector<8x128xf32>
    %319 = arith.mulf %272, %318 : vector<8x128xf32>
    %320 = arith.addf %317, %319 : vector<8x128xf32>
    %321 = vector.broadcast %59 : f32 to vector<8x128xf32>
    %322 = arith.mulf %304, %321 : vector<8x128xf32>
    %323 = arith.addf %320, %322 : vector<8x128xf32>
    %cst_188 = arith.constant 5.000000e-01 : f32
    %324 = vector.broadcast %cst_188 : f32 to vector<8x128xf32>
    %325 = arith.mulf %324, %323 : vector<8x128xf32>
    %326 = math.tanh %325 : vector<8x128xf32>
    %cst_189 = arith.constant 5.000000e-01 : f32
    %327 = vector.broadcast %cst_189 : f32 to vector<8x128xf32>
    %328 = arith.mulf %327, %326 : vector<8x128xf32>
    %cst_190 = arith.constant 5.000000e-01 : f32
    %329 = vector.broadcast %cst_190 : f32 to vector<8x128xf32>
    %330 = arith.addf %328, %329 : vector<8x128xf32>
    %331 = vector.broadcast %60 : f32 to vector<8x128xf32>
    %332 = arith.mulf %144, %331 : vector<8x128xf32>
    %333 = vector.broadcast %79 : f32 to vector<8x128xf32>
    %334 = arith.addf %332, %333 : vector<8x128xf32>
    %335 = vector.broadcast %61 : f32 to vector<8x128xf32>
    %336 = arith.mulf %176, %335 : vector<8x128xf32>
    %337 = arith.addf %334, %336 : vector<8x128xf32>
    %338 = vector.broadcast %62 : f32 to vector<8x128xf32>
    %339 = arith.mulf %208, %338 : vector<8x128xf32>
    %340 = arith.addf %337, %339 : vector<8x128xf32>
    %341 = vector.broadcast %63 : f32 to vector<8x128xf32>
    %342 = arith.mulf %240, %341 : vector<8x128xf32>
    %343 = arith.addf %340, %342 : vector<8x128xf32>
    %344 = vector.broadcast %64 : f32 to vector<8x128xf32>
    %345 = arith.mulf %272, %344 : vector<8x128xf32>
    %346 = arith.addf %343, %345 : vector<8x128xf32>
    %347 = vector.broadcast %65 : f32 to vector<8x128xf32>
    %348 = arith.mulf %304, %347 : vector<8x128xf32>
    %349 = arith.addf %346, %348 : vector<8x128xf32>
    %cst_191 = arith.constant 5.000000e-01 : f32
    %350 = vector.broadcast %cst_191 : f32 to vector<8x128xf32>
    %351 = arith.mulf %350, %349 : vector<8x128xf32>
    %352 = math.tanh %351 : vector<8x128xf32>
    %cst_192 = arith.constant 5.000000e-01 : f32
    %353 = vector.broadcast %cst_192 : f32 to vector<8x128xf32>
    %354 = arith.mulf %353, %352 : vector<8x128xf32>
    %cst_193 = arith.constant 5.000000e-01 : f32
    %355 = vector.broadcast %cst_193 : f32 to vector<8x128xf32>
    %356 = arith.addf %354, %355 : vector<8x128xf32>
    %357 = vector.broadcast %66 : f32 to vector<8x128xf32>
    %358 = arith.mulf %144, %357 : vector<8x128xf32>
    %359 = vector.broadcast %80 : f32 to vector<8x128xf32>
    %360 = arith.addf %358, %359 : vector<8x128xf32>
    %361 = vector.broadcast %67 : f32 to vector<8x128xf32>
    %362 = arith.mulf %176, %361 : vector<8x128xf32>
    %363 = arith.addf %360, %362 : vector<8x128xf32>
    %364 = vector.broadcast %68 : f32 to vector<8x128xf32>
    %365 = arith.mulf %208, %364 : vector<8x128xf32>
    %366 = arith.addf %363, %365 : vector<8x128xf32>
    %367 = vector.broadcast %69 : f32 to vector<8x128xf32>
    %368 = arith.mulf %240, %367 : vector<8x128xf32>
    %369 = arith.addf %366, %368 : vector<8x128xf32>
    %370 = vector.broadcast %70 : f32 to vector<8x128xf32>
    %371 = arith.mulf %272, %370 : vector<8x128xf32>
    %372 = arith.addf %369, %371 : vector<8x128xf32>
    %373 = vector.broadcast %71 : f32 to vector<8x128xf32>
    %374 = arith.mulf %304, %373 : vector<8x128xf32>
    %375 = arith.addf %372, %374 : vector<8x128xf32>
    %cst_194 = arith.constant 5.000000e-01 : f32
    %376 = vector.broadcast %cst_194 : f32 to vector<8x128xf32>
    %377 = arith.mulf %376, %375 : vector<8x128xf32>
    %378 = math.tanh %377 : vector<8x128xf32>
    %cst_195 = arith.constant 5.000000e-01 : f32
    %379 = vector.broadcast %cst_195 : f32 to vector<8x128xf32>
    %380 = arith.mulf %379, %378 : vector<8x128xf32>
    %cst_196 = arith.constant 5.000000e-01 : f32
    %381 = vector.broadcast %cst_196 : f32 to vector<8x128xf32>
    %382 = arith.addf %380, %381 : vector<8x128xf32>
    %383 = vector.broadcast %72 : f32 to vector<8x128xf32>
    %384 = arith.mulf %144, %383 : vector<8x128xf32>
    %385 = vector.broadcast %81 : f32 to vector<8x128xf32>
    %386 = arith.addf %384, %385 : vector<8x128xf32>
    %387 = vector.broadcast %73 : f32 to vector<8x128xf32>
    %388 = arith.mulf %176, %387 : vector<8x128xf32>
    %389 = arith.addf %386, %388 : vector<8x128xf32>
    %390 = vector.broadcast %74 : f32 to vector<8x128xf32>
    %391 = arith.mulf %208, %390 : vector<8x128xf32>
    %392 = arith.addf %389, %391 : vector<8x128xf32>
    %393 = vector.broadcast %75 : f32 to vector<8x128xf32>
    %394 = arith.mulf %240, %393 : vector<8x128xf32>
    %395 = arith.addf %392, %394 : vector<8x128xf32>
    %396 = vector.broadcast %76 : f32 to vector<8x128xf32>
    %397 = arith.mulf %272, %396 : vector<8x128xf32>
    %398 = arith.addf %395, %397 : vector<8x128xf32>
    %399 = vector.broadcast %77 : f32 to vector<8x128xf32>
    %400 = arith.mulf %304, %399 : vector<8x128xf32>
    %401 = arith.addf %398, %400 : vector<8x128xf32>
    %cst_197 = arith.constant 5.000000e-01 : f32
    %402 = vector.broadcast %cst_197 : f32 to vector<8x128xf32>
    %403 = arith.mulf %402, %401 : vector<8x128xf32>
    %404 = math.tanh %403 : vector<8x128xf32>
    %cst_198 = arith.constant 5.000000e-01 : f32
    %405 = vector.broadcast %cst_198 : f32 to vector<8x128xf32>
    %406 = arith.mulf %405, %404 : vector<8x128xf32>
    %cst_199 = arith.constant 5.000000e-01 : f32
    %407 = vector.broadcast %cst_199 : f32 to vector<8x128xf32>
    %408 = arith.addf %406, %407 : vector<8x128xf32>
    %409 = vector.broadcast %82 : f32 to vector<8x128xf32>
    %410 = arith.mulf %330, %409 : vector<8x128xf32>
    %411 = vector.broadcast %86 : f32 to vector<8x128xf32>
    %412 = arith.addf %410, %411 : vector<8x128xf32>
    %413 = vector.broadcast %83 : f32 to vector<8x128xf32>
    %414 = arith.mulf %356, %413 : vector<8x128xf32>
    %415 = arith.addf %412, %414 : vector<8x128xf32>
    %416 = vector.broadcast %84 : f32 to vector<8x128xf32>
    %417 = arith.mulf %382, %416 : vector<8x128xf32>
    %418 = arith.addf %415, %417 : vector<8x128xf32>
    %419 = vector.broadcast %85 : f32 to vector<8x128xf32>
    %420 = arith.mulf %408, %419 : vector<8x128xf32>
    %421 = arith.addf %418, %420 : vector<8x128xf32>
    %cst_200 = arith.constant 5.000000e-01 : f32
    %422 = vector.broadcast %cst_200 : f32 to vector<8x128xf32>
    %423 = arith.mulf %422, %421 : vector<8x128xf32>
    %424 = math.tanh %423 : vector<8x128xf32>
    %cst_201 = arith.constant 5.000000e-01 : f32
    %425 = vector.broadcast %cst_201 : f32 to vector<8x128xf32>
    %426 = arith.mulf %425, %424 : vector<8x128xf32>
    %cst_202 = arith.constant 5.000000e-01 : f32
    %427 = vector.broadcast %cst_202 : f32 to vector<8x128xf32>
    %428 = arith.addf %426, %427 : vector<8x128xf32>
    %c0_203 = arith.constant 0 : index
    %429 = arith.index_cast %88 : i32 to index
    %c0_204 = arith.constant 0 : index
    %430 = vector.load %arg8[%c0_203, %429, %c0_204] : memref<1x8x128xf32, #tpu.memory_space<vmem>>, vector<1x8x128xf32>
    %431 = vector.shape_cast %430 : vector<1x8x128xf32> to vector<8x128xf32>
    %432 = vector.shape_cast %428 : vector<8x128xf32> to vector<1x8x128xf32>
    tpu.vector_store %arg8[%c0_203, %429, %c0_204], %432 {strides = array<i32>} : memref<1x8x128xf32, #tpu.memory_space<vmem>>, vector<1x8x128xf32>,
    %c1_i32 = arith.constant 1 : i32
    return
  }
  func.func @transform_0(%arg0: i32) -> (i32, i32, i32) {
    %c0_i32 = arith.constant 0 : i32
    %c0_i32_0 = arith.constant 0 : i32
    %c0_i32_1 = arith.constant 0 : i32
    return %c0_i32, %arg0, %c0_i32_0 : i32, i32, i32
  }
  func.func @transform_1(%arg0: i32) -> (i32, i32) {
    %c0_i32 = arith.constant 0 : i32
    %c0_i32_0 = arith.constant 0 : i32
    %c0_i32_1 = arith.constant 0 : i32
    return %c0_i32, %c0_i32_0 : i32, i32
  }
  func.func @transform_2(%arg0: i32) -> i32 {
    %c0_i32 = arith.constant 0 : i32
    %c0_i32_0 = arith.constant 0 : i32
    return %c0_i32 : i32
  }
  func.func @transform_3(%arg0: i32) -> (i32, i32) {
    %c0_i32 = arith.constant 0 : i32
    %c0_i32_0 = arith.constant 0 : i32
    %c0_i32_1 = arith.constant 0 : i32
    return %c0_i32, %c0_i32_0 : i32, i32
  }
  func.func @transform_4(%arg0: i32) -> i32 {
    %c0_i32 = arith.constant 0 : i32
    %c0_i32_0 = arith.constant 0 : i32
    return %c0_i32 : i32
  }
  func.func @transform_5(%arg0: i32) -> (i32, i32) {
    %c0_i32 = arith.constant 0 : i32
    %c0_i32_0 = arith.constant 0 : i32
    %c0_i32_1 = arith.constant 0 : i32
    return %c0_i32, %c0_i32_0 : i32, i32
  }
  func.func @transform_6(%arg0: i32) -> i32 {
    %c0_i32 = arith.constant 0 : i32
    %c0_i32_0 = arith.constant 0 : i32
    return %c0_i32 : i32
  }
  func.func @transform_7(%arg0: i32) -> (i32, i32, i32) {
    %c0_i32 = arith.constant 0 : i32
    %c0_i32_0 = arith.constant 0 : i32
    %c0_i32_1 = arith.constant 0 : i32
    return %c0_i32, %arg0, %c0_i32_0 : i32, i32, i32
  }
}

</mosaic_0001>

<llo_original>
// kernel: mlp_forward.1
$region0: #{mlp_forward.1}
  #allocation0 [shape = 'u32[]', space=smem, size = 0x4, offset = 0x4, fixed_abs, tag = 'smem constant byte address 0x4 - core index']
  #allocation1 [shape = 'u32[72,128]{1,0:T(1,128)}', space=vmem, size = 0x9000, scoped, tag = 'internal scratch']
  #allocation2 [shape = 'f32[1]{0:T(128)S(6)}', space=smem, size = 0x200, scoped, tag = 'scoped memory for mlp_forward.1']
  %s0 = inlined_call_operand.vmem [shape: f32[8,8,128], index: 0, kind: input, shape index: {}]
  %s1 = inlined_call_operand.vmem [shape: f32[6,8], index: 1, kind: input, shape index: {}]
  %s2 = inlined_call_operand.vmem [shape: f32[6], index: 2, kind: input, shape index: {}]
  %s3 = inlined_call_operand.vmem [shape: f32[4,6], index: 3, kind: input, shape index: {}]
  %s4 = inlined_call_operand.vmem [shape: f32[4], index: 4, kind: input, shape index: {}]
  %s5 = inlined_call_operand.vmem [shape: f32[1,4], index: 5, kind: input, shape index: {}]
  %s6 = inlined_call_operand.<no memory space> [shape: f32[1], index: 6, kind: input, shape index: {}]
  %s7 = inlined_call_operand.vmem [shape: f32[1,8,128], index: 7, kind: output, shape index: {}]
  %s8 = sld [smem:[#allocation0]]
  $region58: #{mlp_forward.1} parent=0
    _
  %s10 = ssub.s32 1, %s8
  %s11 = scalar_select 0, %s10, %s8
  %12 = sst [smem:[#allocation2]] %s6
  $region1: #{mlp_forward.1} parent=0
    #allocation3 [shape = 'u8[4096]{0}', space=smem, size = 0x1000, scoped, tag = 'input window, operand 1, single buffered']
    #allocation4 [shape = 's32[1]{0}', space=sflag, size = 0x4, scoped, tag = 'scoped memory for mlp_forward.1']
    #allocation5 [shape = 'u8[512]{0}', space=smem, size = 0x200, scoped, tag = 'input window, operand 2, single buffered']
    #allocation6 [shape = 's32[1]{0}', space=sflag, size = 0x4, scoped, tag = 'scoped memory for mlp_forward.1']
    #allocation7 [shape = 'u8[2048]{0}', space=smem, size = 0x800, scoped, tag = 'input window, operand 3, single buffered']
    #allocation8 [shape = 'u8[512]{0}', space=smem, size = 0x200, scoped, tag = 'input window, operand 4, single buffered']
    #allocation9 [shape = 's32[1]{0}', space=sflag, size = 0x4, scoped, tag = 'scoped memory for mlp_forward.1']
    #allocation10 [shape = 'u8[512]{0}', space=smem, size = 0x200, scoped, tag = 'input window, operand 5, single buffered']
    %13 = vsyncpa [#allocation4], 0
    %14 = vsyncpa [#allocation6], 0
    %15 = vsyncpa [#allocation9], 0
    // Predicated region
    $region2: #{mlp_forward.1} parent=1 // pred_check
      _
    $region3: #{mlp_forward.1} parent=1 // pred_check_branch
      %17 = sbr.rel (0) target = $region5
    $region4: #{mlp_forward.1} parent=1 // pred_region
      _
    $region5: #{mlp_forward.1} parent=1 // pred_fallthru
      _
    // Predicated region
    $region6: #{mlp_forward.1} parent=1 // pred_check
      _
    $region7: #{mlp_forward.1} parent=1 // pred_check_branch
      %19 = sbr.rel (0) target = $region9
    $region8: #{mlp_forward.1} parent=1 // pred_region
      %21 = vsyncadd [#allocation4], 0
      %s23 = sshll.u32 %s1, 4
      %s24 = int_to_ptr.vmem [resolvable:$true] %s23
      %26 = dma.vmem_to_smem %s24, 128, [#allocation3], [#allocation4]
    $region9: #{mlp_forward.1} parent=1 // pred_fallthru
      _
    // Predicated region
    $region10: #{mlp_forward.1} parent=1 // pred_check
      _
    $region11: #{mlp_forward.1} parent=1 // pred_check_branch
      %28 = sbr.rel (0) target = $region13
    $region12: #{mlp_forward.1} parent=1 // pred_region
      %30 = vsyncadd [#allocation6], 0
      %s32 = sshll.u32 %s2, 4
      %s33 = int_to_ptr.vmem [resolvable:$true] %s32
      %35 = dma.vmem_to_smem %s33, 16, [#allocation5], [#allocation6]
    $region13: #{mlp_forward.1} parent=1 // pred_fallthru
      _
    // Predicated region
    $region14: #{mlp_forward.1} parent=1 // pred_check
      _
    $region15: #{mlp_forward.1} parent=1 // pred_check_branch
      %37 = sbr.rel (0) target = $region17
    $region16: #{mlp_forward.1} parent=1 // pred_region
      %39 = vsyncadd [#allocation6], 0
      %s41 = sshll.u32 %s3, 4
      %s42 = int_to_ptr.vmem [resolvable:$true] %s41
      %44 = dma.vmem_to_smem %s42, 64, [#allocation7], [#allocation6]
    $region17: #{mlp_forward.1} parent=1 // pred_fallthru
      _
    // Predicated region
    $region18: #{mlp_forward.1} parent=1 // pred_check
      _
    $region19: #{mlp_forward.1} parent=1 // pred_check_branch
      %46 = sbr.rel (0) target = $region21
    $region20: #{mlp_forward.1} parent=1 // pred_region
      %48 = vsyncadd [#allocation9], 0
      %s50 = sshll.u32 %s4, 4
      %s51 = int_to_ptr.vmem [resolvable:$true] %s50
      %53 = dma.vmem_to_smem %s51, 16, [#allocation8], [#allocation9]
    $region21: #{mlp_forward.1} parent=1 // pred_fallthru
      _
    // Predicated region
    $region22: #{mlp_forward.1} parent=1 // pred_check
      _
    $region23: #{mlp_forward.1} parent=1 // pred_check_branch
      %55 = sbr.rel (0) target = $region25
    $region24: #{mlp_forward.1} parent=1 // pred_region
      %57 = vsyncadd [#allocation9], 0
      %s59 = sshll.u32 %s5, 4
      %s60 = int_to_ptr.vmem [resolvable:$true] %s59
      %62 = dma.vmem_to_smem %s60, 16, [#allocation10], [#allocation9]
    $region25: #{mlp_forward.1} parent=1 // pred_fallthru
      _
    // Predicated region
    $region26: #{mlp_forward.1} parent=1 // pred_check
      _
    $region27: #{mlp_forward.1} parent=1 // pred_check_branch
      %64 = sbr.rel (0) target = $region29
    $region28: #{mlp_forward.1} parent=1 // pred_region
      _
    $region29: #{mlp_forward.1} parent=1 // pred_fallthru
      _
    // Predicated region
    $region30: #{mlp_forward.1} parent=1 // pred_check
      _
    $region31: #{mlp_forward.1} parent=1 // pred_check_branch
      %66 = sbr.rel (0) target = $region33
    $region32: #{mlp_forward.1} parent=1 // pred_region
      %68 = dma.done [#allocation4], 128
    $region33: #{mlp_forward.1} parent=1 // pred_fallthru
      _
    // Predicated region
    $region34: #{mlp_forward.1} parent=1 // pred_check
      _
    $region35: #{mlp_forward.1} parent=1 // pred_check_branch
      %70 = sbr.rel (0) target = $region37
    $region36: #{mlp_forward.1} parent=1 // pred_region
      %72 = dma.done [#allocation6], 16
    $region37: #{mlp_forward.1} parent=1 // pred_fallthru
      _
    // Predicated region
    $region38: #{mlp_forward.1} parent=1 // pred_check
      _
    $region39: #{mlp_forward.1} parent=1 // pred_check_branch
      %74 = sbr.rel (0) target = $region41
    $region40: #{mlp_forward.1} parent=1 // pred_region
      %76 = dma.done [#allocation6], 64
    $region41: #{mlp_forward.1} parent=1 // pred_fallthru
      _
    // Predicated region
    $region42: #{mlp_forward.1} parent=1 // pred_check
      _
    $region43: #{mlp_forward.1} parent=1 // pred_check_branch
      %78 = sbr.rel (0) target = $region45
    $region44: #{mlp_forward.1} parent=1 // pred_region
      %80 = dma.done [#allocation9], 16
    $region45: #{mlp_forward.1} parent=1 // pred_fallthru
      _
    // Predicated region
    $region46: #{mlp_forward.1} parent=1 // pred_check
      _
    $region47: #{mlp_forward.1} parent=1 // pred_check_branch
      %82 = sbr.rel (0) target = $region49
    $region48: #{mlp_forward.1} parent=1 // pred_region
      %84 = dma.done [#allocation9], 16
    $region49: #{mlp_forward.1} parent=1 // pred_fallthru
      _
    %85 = sfence
    %s86 = sld [smem:[#allocation3]]
    %s87 = sld [smem:[#allocation3 + $0x1]]
    %s88 = sld [smem:[#allocation3 + $0x2]]
    %s89 = sld [smem:[#allocation3 + $0x3]]
    %s90 = sld [smem:[#allocation3 + $0x4]]
    %s91 = sld [smem:[#allocation3 + $0x5]]
    %s92 = sld [smem:[#allocation3 + $0x6]]
    %s93 = sld [smem:[#allocation3 + $0x7]]
    %s94 = sld [smem:[#allocation3 + $0x80]]
    %s95 = sld [smem:[#allocation3 + $0x81]]
    %s96 = sld [smem:[#allocation3 + $0x82]]
    %s97 = sld [smem:[#allocation3 + $0x83]]
    %s98 = sld [smem:[#allocation3 + $0x84]]
    %s99 = sld [smem:[#allocation3 + $0x85]]
    %s100 = sld [smem:[#allocation3 + $0x86]]
    %s101 = sld [smem:[#allocation3 + $0x87]]
    %s102 = sld [smem:[#allocation3 + $0x100]]
    %s103 = sld [smem:[#allocation3 + $0x101]]
    %s104 = sld [smem:[#allocation3 + $0x102]]
    %s105 = sld [smem:[#allocation3 + $0x103]]
    %s106 = sld [smem:[#allocation3 + $0x104]]
    %s107 = sld [smem:[#allocation3 + $0x105]]
    %s108 = sld [smem:[#allocation3 + $0x106]]
    %s109 = sld [smem:[#allocation3 + $0x107]]
    %s110 = sld [smem:[#allocation3 + $0x180]]
    %s111 = sld [smem:[#allocation3 + $0x181]]
    %s112 = sld [smem:[#allocation3 + $0x182]]
    %s113 = sld [smem:[#allocation3 + $0x183]]
    %s114 = sld [smem:[#allocation3 + $0x184]]
    %s115 = sld [smem:[#allocation3 + $0x185]]
    %s116 = sld [smem:[#allocation3 + $0x186]]
    %s117 = sld [smem:[#allocation3 + $0x187]]
    %s118 = sld [smem:[#allocation3 + $0x200]]
    %s119 = sld [smem:[#allocation3 + $0x201]]
    %s120 = sld [smem:[#allocation3 + $0x202]]
    %s121 = sld [smem:[#allocation3 + $0x203]]
    %s122 = sld [smem:[#allocation3 + $0x204]]
    %s123 = sld [smem:[#allocation3 + $0x205]]
    %s124 = sld [smem:[#allocation3 + $0x206]]
    %s125 = sld [smem:[#allocation3 + $0x207]]
    %s126 = sld [smem:[#allocation3 + $0x280]]
    %s127 = sld [smem:[#allocation3 + $0x281]]
    %s128 = sld [smem:[#allocation3 + $0x282]]
    %s129 = sld [smem:[#allocation3 + $0x283]]
    %s130 = sld [smem:[#allocation3 + $0x284]]
    %s131 = sld [smem:[#allocation3 + $0x285]]
    %s132 = sld [smem:[#allocation3 + $0x286]]
    %s133 = sld [smem:[#allocation3 + $0x287]]
    %s134 = sld [smem:[#allocation5]]
    %s135 = sld [smem:[#allocation5 + $0x1]]
    %s136 = sld [smem:[#allocation5 + $0x2]]
    %s137 = sld [smem:[#allocation5 + $0x3]]
    %s138 = sld [smem:[#allocation5 + $0x4]]
    %s139 = sld [smem:[#allocation5 + $0x5]]
    %s140 = sld [smem:[#allocation7]]
    %s141 = sld [smem:[#allocation7 + $0x1]]
    %s142 = sld [smem:[#allocation7 + $0x2]]
    %s143 = sld [smem:[#allocation7 + $0x3]]
    %s144 = sld [smem:[#allocation7 + $0x4]]
    %s145 = sld [smem:[#allocation7 + $0x5]]
    %s146 = sld [smem:[#allocation7 + $0x80]]
    %s147 = sld [smem:[#allocation7 + $0x81]]
    %s148 = sld [smem:[#allocation7 + $0x82]]
    %s149 = sld [smem:[#allocation7 + $0x83]]
    %s150 = sld [smem:[#allocation7 + $0x84]]
    %s151 = sld [smem:[#allocation7 + $0x85]]
    %s152 = sld [smem:[#allocation7 + $0x100]]
    %s153 = sld [smem:[#allocation7 + $0x101]]
    %s154 = sld [smem:[#allocation7 + $0x102]]
    %s155 = sld [smem:[#allocation7 + $0x103]]
    %s156 = sld [smem:[#allocation7 + $0x104]]
    %s157 = sld [smem:[#allocation7 + $0x105]]
    %s158 = sld [smem:[#allocation7 + $0x180]]
    %s159 = sld [smem:[#allocation7 + $0x181]]
    %s160 = sld [smem:[#allocation7 + $0x182]]
    %s161 = sld [smem:[#allocation7 + $0x183]]
    %s162 = sld [smem:[#allocation7 + $0x184]]
    %s163 = sld [smem:[#allocation7 + $0x185]]
    %s164 = sld [smem:[#allocation8]]
    %s165 = sld [smem:[#allocation8 + $0x1]]
    %s166 = sld [smem:[#allocation8 + $0x2]]
    %s167 = sld [smem:[#allocation8 + $0x3]]
    %s168 = sld [smem:[#allocation10]]
    %s169 = sld [smem:[#allocation10 + $0x1]]
    %s170 = sld [smem:[#allocation10 + $0x2]]
    %s171 = sld [smem:[#allocation10 + $0x3]]
    %s172 = sld [smem:[#allocation2]]
    %v173 = vld [vmem:[%s0] sm:$0xff]
    %s174 = sadd.s32 0, 8
    %s175 = scalar_lea.vmem %s0, %s174
    %v176 = vld [vmem:[%s175] sm:$0xff]
    %s177 = sadd.s32 0, 16
    %s178 = scalar_lea.vmem %s0, %s177
    %v179 = vld [vmem:[%s178] sm:$0xff]
    %s180 = sadd.s32 0, 24
    %s181 = scalar_lea.vmem %s0, %s180
    %v182 = vld [vmem:[%s181] sm:$0xff]
    %s183 = sadd.s32 0, 32
    %s184 = scalar_lea.vmem %s0, %s183
    %v185 = vld [vmem:[%s184] sm:$0xff]
    %s186 = sadd.s32 0, 40
    %s187 = scalar_lea.vmem %s0, %s186
    %v188 = vld [vmem:[%s187] sm:$0xff]
    %s189 = sadd.s32 0, 48
    %s190 = scalar_lea.vmem %s0, %s189
    %v191 = vld [vmem:[%s190] sm:$0xff]
    %s192 = sadd.s32 0, 56
    %s193 = scalar_lea.vmem %s0, %s192
    %v194 = vld [vmem:[%s193] sm:$0xff]
    %v195 = vstv %s86
    %v196 = vmul.f32 %v173, %v195
    %v197 = vstv %s134
    %v198 = vadd.f32 %v196, %v197
    %v199 = vstv %s87
    %v200 = vmul.f32 %v176, %v199
    %v201 = vadd.f32 %v198, %v200
    %v202 = vstv %s88
    %v203 = vmul.f32 %v179, %v202
    %v204 = vadd.f32 %v201, %v203
    %v205 = vstv %s89
    %v206 = vmul.f32 %v182, %v205
    %v207 = vadd.f32 %v204, %v206
    %v208 = vstv %s90
    %v209 = vmul.f32 %v185, %v208
    %v210 = vadd.f32 %v207, %v209
    %v211 = vstv %s91
    %v212 = vmul.f32 %v188, %v211
    %v213 = vadd.f32 %v210, %v212
    %v214 = vstv %s92
    %v215 = vmul.f32 %v191, %v214
    %v216 = vadd.f32 %v213, %v215
    %v217 = vstv %s93
    %v218 = vmul.f32 %v194, %v217
    %v219 = vadd.f32 %v216, %v218
    %v220 = vmul.f32 %v219, 0.5
    %v221 = vtanh.pop %v220
    %v222 = vmul.f32 %v221, 0.5
    %v223 = vadd.f32 %v222, 0.5
    %v224 = vstv %s94
    %v225 = vmul.f32 %v173, %v224
    %v226 = vstv %s135
    %v227 = vadd.f32 %v225, %v226
    %v228 = vstv %s95
    %v229 = vmul.f32 %v176, %v228
    %v230 = vadd.f32 %v227, %v229
    %v231 = vstv %s96
    %v232 = vmul.f32 %v179, %v231
    %v233 = vadd.f32 %v230, %v232
    %v234 = vstv %s97
    %v235 = vmul.f32 %v182, %v234
    %v236 = vadd.f32 %v233, %v235
    %v237 = vstv %s98
    %v238 = vmul.f32 %v185, %v237
    %v239 = vadd.f32 %v236, %v238
    %v240 = vstv %s99
    %v241 = vmul.f32 %v188, %v240
    %v242 = vadd.f32 %v239, %v241
    %v243 = vstv %s100
    %v244 = vmul.f32 %v191, %v243
    %v245 = vadd.f32 %v242, %v244
    %v246 = vstv %s101
    %v247 = vmul.f32 %v194, %v246
    %v248 = vadd.f32 %v245, %v247
    %v249 = vmul.f32 %v248, 0.5
    %v250 = vtanh.pop %v249
    %v251 = vmul.f32 %v250, 0.5
    %v252 = vadd.f32 %v251, 0.5
    %v253 = vstv %s102
    %v254 = vmul.f32 %v173, %v253
    %v255 = vstv %s136
    %v256 = vadd.f32 %v254, %v255
    %v257 = vstv %s103
    %v258 = vmul.f32 %v176, %v257
    %v259 = vadd.f32 %v256, %v258
    %v260 = vstv %s104
    %v261 = vmul.f32 %v179, %v260
    %v262 = vadd.f32 %v259, %v261
    %v263 = vstv %s105
    %v264 = vmul.f32 %v182, %v263
    %v265 = vadd.f32 %v262, %v264
    %v266 = vstv %s106
    %v267 = vmul.f32 %v185, %v266
    %v268 = vadd.f32 %v265, %v267
    %v269 = vstv %s107
    %v270 = vmul.f32 %v188, %v269
    %v271 = vadd.f32 %v268, %v270
    %v272 = vstv %s108
    %v273 = vmul.f32 %v191, %v272
    %v274 = vadd.f32 %v271, %v273
    %v275 = vstv %s109
    %v276 = vmul.f32 %v194, %v275
    %v277 = vadd.f32 %v274, %v276
    %v278 = vmul.f32 %v277, 0.5
    %v279 = vtanh.pop %v278
    %v280 = vmul.f32 %v279, 0.5
    %v281 = vadd.f32 %v280, 0.5
    %v282 = vstv %s110
    %v283 = vmul.f32 %v173, %v282
    %v284 = vstv %s137
    %v285 = vadd.f32 %v283, %v284
    %v286 = vstv %s111
    %v287 = vmul.f32 %v176, %v286
    %v288 = vadd.f32 %v285, %v287
    %v289 = vstv %s112
    %v290 = vmul.f32 %v179, %v289
    %v291 = vadd.f32 %v288, %v290
    %v292 = vstv %s113
    %v293 = vmul.f32 %v182, %v292
    %v294 = vadd.f32 %v291, %v293
    %v295 = vstv %s114
    %v296 = vmul.f32 %v185, %v295
    %v297 = vadd.f32 %v294, %v296
    %v298 = vstv %s115
    %v299 = vmul.f32 %v188, %v298
    %v300 = vadd.f32 %v297, %v299
    %v301 = vstv %s116
    %v302 = vmul.f32 %v191, %v301
    %v303 = vadd.f32 %v300, %v302
    %v304 = vstv %s117
    %v305 = vmul.f32 %v194, %v304
    %v306 = vadd.f32 %v303, %v305
    %v307 = vmul.f32 %v306, 0.5
    %v308 = vtanh.pop %v307
    %v309 = vmul.f32 %v308, 0.5
    %v310 = vadd.f32 %v309, 0.5
    %v311 = vstv %s118
    %v312 = vmul.f32 %v173, %v311
    %v313 = vstv %s138
    %v314 = vadd.f32 %v312, %v313
    %v315 = vstv %s119
    %v316 = vmul.f32 %v176, %v315
    %v317 = vadd.f32 %v314, %v316
    %v318 = vstv %s120
    %v319 = vmul.f32 %v179, %v318
    %v320 = vadd.f32 %v317, %v319
    %v321 = vstv %s121
    %v322 = vmul.f32 %v182, %v321
    %v323 = vadd.f32 %v320, %v322
    %v324 = vstv %s122
    %v325 = vmul.f32 %v185, %v324
    %v326 = vadd.f32 %v323, %v325
    %v327 = vstv %s123
    %v328 = vmul.f32 %v188, %v327
    %v329 = vadd.f32 %v326, %v328
    %v330 = vstv %s124
    %v331 = vmul.f32 %v191, %v330
    %v332 = vadd.f32 %v329, %v331
    %v333 = vstv %s125
    %v334 = vmul.f32 %v194, %v333
    %v335 = vadd.f32 %v332, %v334
    %v336 = vmul.f32 %v335, 0.5
    %v337 = vtanh.pop %v336
    %v338 = vmul.f32 %v337, 0.5
    %v339 = vadd.f32 %v338, 0.5
    %v340 = vstv %s126
    %v341 = vmul.f32 %v173, %v340
    %v342 = vstv %s139
    %v343 = vadd.f32 %v341, %v342
    %v344 = vstv %s127
    %v345 = vmul.f32 %v176, %v344
    %v346 = vadd.f32 %v343, %v345
    %v347 = vstv %s128
    %v348 = vmul.f32 %v179, %v347
    %v349 = vadd.f32 %v346, %v348
    %v350 = vstv %s129
    %v351 = vmul.f32 %v182, %v350
    %v352 = vadd.f32 %v349, %v351
    %v353 = vstv %s130
    %v354 = vmul.f32 %v185, %v353
    %v355 = vadd.f32 %v352, %v354
    %v356 = vstv %s131
    %v357 = vmul.f32 %v188, %v356
    %v358 = vadd.f32 %v355, %v357
    %v359 = vstv %s132
    %v360 = vmul.f32 %v191, %v359
    %v361 = vadd.f32 %v358, %v360
    %v362 = vstv %s133
    %v363 = vmul.f32 %v194, %v362
    %v364 = vadd.f32 %v361, %v363
    %v365 = vmul.f32 %v364, 0.5
    %v366 = vtanh.pop %v365
    %v367 = vmul.f32 %v366, 0.5
    %v368 = vadd.f32 %v367, 0.5
    %v369 = vstv %s140
    %v370 = vmul.f32 %v223, %v369
    %v371 = vstv %s164
    %v372 = vadd.f32 %v370, %v371
    %v373 = vstv %s141
    %v374 = vmul.f32 %v252, %v373
    %v375 = vadd.f32 %v372, %v374
    %v376 = vstv %s142
    %v377 = vmul.f32 %v281, %v376
    %v378 = vadd.f32 %v375, %v377
    %v379 = vstv %s143
    %v380 = vmul.f32 %v310, %v379
    %v381 = vadd.f32 %v378, %v380
    %v382 = vstv %s144
    %v383 = vmul.f32 %v339, %v382
    %v384 = vadd.f32 %v381, %v383
    %v385 = vstv %s145
    %v386 = vmul.f32 %v368, %v385
    %v387 = vadd.f32 %v384, %v386
    %v388 = vmul.f32 %v387, 0.5
    %v389 = vtanh.pop %v388
    %v390 = vmul.f32 %v389, 0.5
    %v391 = vadd.f32 %v390, 0.5
    %v392 = vstv %s146
    %v393 = vmul.f32 %v223, %v392
    %v394 = vstv %s165
    %v395 = vadd.f32 %v393, %v394
    %v396 = vstv %s147
    %v397 = vmul.f32 %v252, %v396
    %v398 = vadd.f32 %v395, %v397
    %v399 = vstv %s148
    %v400 = vmul.f32 %v281, %v399
    %v401 = vadd.f32 %v398, %v400
    %v402 = vstv %s149
    %v403 = vmul.f32 %v310, %v402
    %v404 = vadd.f32 %v401, %v403
    %v405 = vstv %s150
    %v406 = vmul.f32 %v339, %v405
    %v407 = vadd.f32 %v404, %v406
    %v408 = vstv %s151
    %v409 = vmul.f32 %v368, %v408
    %v410 = vadd.f32 %v407, %v409
    %v411 = vmul.f32 %v410, 0.5
    %v412 = vtanh.pop %v411
    %v413 = vmul.f32 %v412, 0.5
    %v414 = vadd.f32 %v413, 0.5
    %v415 = vstv %s152
    %v416 = vmul.f32 %v223, %v415
    %v417 = vstv %s166
    %v418 = vadd.f32 %v416, %v417
    %v419 = vstv %s153
    %v420 = vmul.f32 %v252, %v419
    %v421 = vadd.f32 %v418, %v420
    %v422 = vstv %s154
    %v423 = vmul.f32 %v281, %v422
    %v424 = vadd.f32 %v421, %v423
    %v425 = vstv %s155
    %v426 = vmul.f32 %v310, %v425
    %v427 = vadd.f32 %v424, %v426
    %v428 = vstv %s156
    %v429 = vmul.f32 %v339, %v428
    %v430 = vadd.f32 %v427, %v429
    %v431 = vstv %s157
    %v432 = vmul.f32 %v368, %v431
    %v433 = vadd.f32 %v430, %v432
    %v434 = vmul.f32 %v433, 0.5
    %v435 = vtanh.pop %v434
    %v436 = vmul.f32 %v435, 0.5
    %v437 = vadd.f32 %v436, 0.5
    %v438 = vstv %s158
    %v439 = vmul.f32 %v223, %v438
    %v440 = vstv %s167
    %v441 = vadd.f32 %v439, %v440
    %v442 = vstv %s159
    %v443 = vmul.f32 %v252, %v442
    %v444 = vadd.f32 %v441, %v443
    %v445 = vstv %s160
    %v446 = vmul.f32 %v281, %v445
    %v447 = vadd.f32 %v444, %v446
    %v448 = vstv %s161
    %v449 = vmul.f32 %v310, %v448
    %v450 = vadd.f32 %v447, %v449
    %v451 = vstv %s162
    %v452 = vmul.f32 %v339, %v451
    %v453 = vadd.f32 %v450, %v452
    %v454 = vstv %s163
    %v455 = vmul.f32 %v368, %v454
    %v456 = vadd.f32 %v453, %v455
    %v457 = vmul.f32 %v456, 0.5
    %v458 = vtanh.pop %v457
    %v459 = vmul.f32 %v458, 0.5
    %v460 = vadd.f32 %v459, 0.5
    %v461 = vstv %s168
    %v462 = vmul.f32 %v391, %v461
    %v463 = vstv %s172
    %v464 = vadd.f32 %v462, %v463
    %v465 = vstv %s169
    %v466 = vmul.f32 %v414, %v465
    %v467 = vadd.f32 %v464, %v466
    %v468 = vstv %s170
    %v469 = vmul.f32 %v437, %v468
    %v470 = vadd.f32 %v467, %v469
    %v471 = vstv %s171
    %v472 = vmul.f32 %v460, %v471
    %v473 = vadd.f32 %v470, %v472
    %v474 = vmul.f32 %v473, 0.5
    %v475 = vtanh.pop %v474
    %v476 = vmul.f32 %v475, 0.5
    %v477 = vadd.f32 %v476, 0.5
    %478 = vst [vmem:[%s7] sm:$0xff] %v477
    // Predicated region
    $region50: #{mlp_forward.1} parent=1 // pred_check
      _
    $region51: #{mlp_forward.1} parent=1 // pred_check_branch
      %480 = sbr.rel (0) target = $region53
    $region52: #{mlp_forward.1} parent=1 // pred_region
      _
    $region53: #{mlp_forward.1} parent=1 // pred_fallthru
      _
    // Predicated region
    $region54: #{mlp_forward.1} parent=1 // pred_check
      _
    $region55: #{mlp_forward.1} parent=1 // pred_check_branch
      %482 = sbr.rel (0) target = $region57
    $region56: #{mlp_forward.1} parent=1 // pred_region
      _
    $region57: #{mlp_forward.1} parent=1 // pred_fallthru
      _
    %483 = vsyncpa [#allocation4], 1
    %484 = vsyncpa [#allocation6], 1
    %485 = vsyncpa [#allocation9], 1

</llo_original>
